<compile_context>
chip_gen: v7x
topology: tpu7x:2x2x1
jax: 0.10.0
libtpu: 0.0.40
codegen_flags: <defaults>
</compile_context>

<pallas_src>
import functools

import jax
import jax.numpy as jnp
from jax.experimental import pallas as pl
from jax.experimental.pallas import tpu as pltpu


def _round_up(x, m):
    return (x + m - 1) // m * m


def _pick_tile_n(dim, target):
    """Largest multiple of 128 that divides `dim` and is <= target; full extent for small/odd dims."""
    if dim <= target:
        return dim
    if dim % 128 != 0:
        # TODO(synk): pad N to a multiple of 128 instead of a full-extent block for very large,
        # non-128-aligned output dims (not hit by standard ViT shapes).
        return dim
    best = 128
    for t in range(128, target + 1, 128):
        if dim % t == 0:
            best = t
    return best


# ---------------------------------------------------------------------------
# Fused (LN) -> matmul -> (+bias) -> (GELU) -> (+residual) kernel (K un-tiled, nk == 1)
# ---------------------------------------------------------------------------
def _fused_linear_kernel(*refs, has_ln, has_res, act, eps):
    x_ref, w_ref, b_ref = refs[0], refs[1], refs[2]
    i = 3
    if has_ln:
        g_ref, bt_ref = refs[i], refs[i + 1]
        i += 2
    if has_res:
        r_ref = refs[i]
        i += 1
    o_ref = refs[i]
    i += 1
    xn_ref = refs[i] if has_ln else None

    if has_ln:
        # Normalize the full (tm, K) row panel once per row tile (j == 0), cache in bf16 VMEM,
        # and reuse for every output-column tile j.
        @pl.when(pl.program_id(1) == 0)
        def _ln():
            xf = x_ref[...].astype(jnp.float32)
            mu = jnp.mean(xf, axis=-1, keepdims=True)
            var = jnp.mean((xf - mu) * (xf - mu), axis=-1, keepdims=True)
            xf = (xf - mu) * jax.lax.rsqrt(var + eps)
            xf = xf * g_ref[...].astype(jnp.float32) + bt_ref[...].astype(jnp.float32)
            xn_ref[...] = xf.astype(jnp.bfloat16)

        xb = xn_ref[...]
    else:
        xb = x_ref[...].astype(jnp.bfloat16)

    # bf16 x bf16 -> f32 on the MXU, single shot (no accumulator scratch needed: K un-tiled).
    y = jnp.dot(xb, w_ref[...], preferred_element_type=jnp.float32)
    y = y + b_ref[...].astype(jnp.float32)
    if act == "gelu":
        # erf formulation (torch nn.GELU default)
        y = 0.5 * y * (1.0 + jax.lax.erf(y * 0.7071067811865476))
    if has_res:
        y = y + r_ref[...].astype(jnp.float32)
    o_ref[...] = y.astype(o_ref.dtype)


def fused_linear(x, w, b, *, gamma=None, beta=None, residual=None, act=None,
                 out_dtype=jnp.bfloat16, tm=1024, tn=768, eps=1e-6):
    """y = [LN(x)] @ w + b, optional GELU, optional + residual.  x:(M,K) w:(K,N) -> (M,N)."""
    M, K = x.shape
    Nf = w.shape[1]
    has_ln = gamma is not None
    has_res = residual is not None

    # ---- tile selection (K is always un-tiled) -------------------------------
    tm_eff = min(tm, _round_up(M, 8))
    Mp = _round_up(M, tm_eff)
    tn_eff = _pick_tile_n(Nf, tn)

    if Mp != M:
        x = jnp.pad(x, ((0, Mp - M), (0, 0)))
        if has_res:
            residual = jnp.pad(residual, ((0, Mp - M), (0, 0)))

    inputs = [x, w.astype(jnp.bfloat16), b.reshape(1, Nf).astype(jnp.float32)]
    in_specs = [
        pl.BlockSpec((tm_eff, K), lambda i, j: (i, 0)),       # resident across j
        pl.BlockSpec((K, tn_eff), lambda i, j: (0, j)),       # resident across i
        pl.BlockSpec((1, tn_eff), lambda i, j: (0, j)),
    ]
    if has_ln:
        inputs += [gamma.reshape(1, K).astype(jnp.float32),
                   beta.reshape(1, K).astype(jnp.float32)]
        in_specs += [pl.BlockSpec((1, K), lambda i, j: (0, 0)),
                     pl.BlockSpec((1, K), lambda i, j: (0, 0))]
    if has_res:
        inputs.append(residual)
        in_specs.append(pl.BlockSpec((tm_eff, tn_eff), lambda i, j: (i, j)))

    scratch_shapes = [pltpu.VMEM((tm_eff, K), jnp.bfloat16)] if has_ln else []

    # VMEM budget estimate (double-buffered pipeline blocks + LN cache), sized for the v7x 64 MiB cap.
    est = 2 * tm_eff * K * 2                                  # x (bf16)
    est += 2 * K * tn_eff * 2                                 # w (bf16)
    est += 2 * tm_eff * tn_eff * jnp.dtype(out_dtype).itemsize
    est += 2 * tn_eff * 4 * 2                                 # bias
    if has_res:
        est += 2 * tm_eff * tn_eff * 2
    if has_ln:
        est += tm_eff * K * 2 + 4 * K * 4 * 2
    vmem_limit = min(max(int(est * 1.25) + (8 << 20), 32 << 20), 48 << 20)

    # LN cache relies on the j axis running in order on one core -> "arbitrary"; otherwise both parallel.
    dims = ("parallel", "arbitrary") if has_ln else ("parallel", "parallel")

    out = pl.pallas_call(
        functools.partial(_fused_linear_kernel, has_ln=has_ln, has_res=has_res,
                          act=act, eps=eps),
        out_shape=jax.ShapeDtypeStruct((Mp, Nf), out_dtype),
        grid=(Mp // tm_eff, Nf // tn_eff),
        in_specs=in_specs,
        out_specs=pl.BlockSpec((tm_eff, tn_eff), lambda i, j: (i, j)),
        scratch_shapes=scratch_shapes,
        compiler_params=pltpu.CompilerParams(
            dimension_semantics=dims,
            vmem_limit_bytes=vmem_limit,
        ),
    )(*inputs)
    return out[:M] if Mp != M else out


# ---------------------------------------------------------------------------
# Multi-head self-attention: all heads of one batch element per grid step.
# Reads Q/K/V per head straight from the (S, 3D) qkv block; each head's result is
# stored immediately into a (S, D) f32 VMEM scratch (bounded live range), then one
# lane-dense cast+store to the output block.
# ---------------------------------------------------------------------------
def _mhsa_kernel(qkv_ref, o_ref, acc_ref, *, heads, dh, scale):
    D = heads * dh
    for h in range(heads):                                    # static unroll over heads
        q = qkv_ref[0, :, h * dh:(h + 1) * dh]
        k = qkv_ref[0, :, D + h * dh:D + (h + 1) * dh]
        v = qkv_ref[0, :, 2 * D + h * dh:2 * D + (h + 1) * dh]
        # q @ k^T without materializing a transpose of K
        s = jax.lax.dot_general(q, k, (((1,), (1,)), ((), ())),
                                preferred_element_type=jnp.float32) * scale
        s = s - jnp.max(s, axis=-1, keepdims=True)
        p = jnp.exp(s)
        p = p * pl.reciprocal(jnp.sum(p, axis=-1, keepdims=True), approx=True)
        acc_ref[:, h * dh:(h + 1) * dh] = jax.lax.dot_general(
            p.astype(jnp.bfloat16), v, (((1,), (0,)), ((), ())),
            preferred_element_type=jnp.float32)
    o_ref[0] = acc_ref[...].astype(o_ref.dtype)


def pallas_mhsa(qkv, *, batch, seq, heads, dh):
    """qkv: (batch*seq, 3D) laid out as [q | k | v] columns -> (batch*seq, D) attention output."""
    # TODO(synk): for long sequences (S >= ~1000) switch to a flash-attention style kv-tiled
    # online-softmax kernel; at ViT sequence lengths the full SxS score per head fits VMEM easily.
    D = heads * dh
    qkv3 = qkv.reshape(batch, seq, 3 * D)
    out = pl.pallas_call(
        functools.partial(_mhsa_kernel, heads=heads, dh=dh, scale=dh ** -0.5),
        out_shape=jax.ShapeDtypeStruct((batch, seq, D), qkv.dtype),
        grid=(batch,),
        in_specs=[pl.BlockSpec((1, seq, 3 * D), lambda b: (b, 0, 0))],
        out_specs=pl.BlockSpec((1, seq, D), lambda b: (b, 0, 0)),
        scratch_shapes=[pltpu.VMEM((seq, D), jnp.float32)],
        compiler_params=pltpu.CompilerParams(dimension_semantics=("parallel",)),
    )(qkv3)
    return out.reshape(batch * seq, D)


# ---------------------------------------------------------------------------
# Final LayerNorm (tiny: CLS tokens only)
# ---------------------------------------------------------------------------
def _layernorm_kernel(x_ref, g_ref, b_ref, o_ref, *, eps):
    x = x_ref[...].astype(jnp.float32)
    mu = jnp.mean(x, axis=-1, keepdims=True)
    var = jnp.mean((x - mu) * (x - mu), axis=-1, keepdims=True)
    y = (x - mu) * jax.lax.rsqrt(var + eps)
    o_ref[...] = (y * g_ref[...] + b_ref[...]).astype(o_ref.dtype)


def pallas_layernorm(x, gamma, beta, eps=1e-6):
    M, D = x.shape
    return pl.pallas_call(
        functools.partial(_layernorm_kernel, eps=eps),
        out_shape=jax.ShapeDtypeStruct((M, D), jnp.float32),
        grid=(1,),
        in_specs=[pl.BlockSpec((M, D), lambda i: (0, 0)),
                  pl.BlockSpec((1, D), lambda i: (0, 0)),
                  pl.BlockSpec((1, D), lambda i: (0, 0))],
        out_specs=pl.BlockSpec((M, D), lambda i: (0, 0)),
    )(x, gamma.reshape(1, D).astype(jnp.float32), beta.reshape(1, D).astype(jnp.float32))


# ---------------------------------------------------------------------------
# Parameters (deterministic synthetic init — no checkpoint loading)
# ---------------------------------------------------------------------------
def init_params(key, *, C, P, D, depth, mlp_hidden, num_patches):
    keys = iter(jax.random.split(key, 8 + 8 * depth))

    def nrm(shape, s=0.02):
        return (s * jax.random.normal(next(keys), shape)).astype(jnp.float32)

    params = {
        "patch_w": nrm((C * P * P, D)),          # conv weight (D, C, P, P) reshaped -> (CPP, D)
        "patch_b": jnp.zeros((D,), jnp.float32),
        "cls": nrm((1, 1, D)),
        "pos": nrm((1, num_patches + 1, D)),
        "ln_f_g": jnp.ones((D,), jnp.float32),
        "ln_f_b": jnp.zeros((D,), jnp.float32),
        "blocks": [],
    }
    for _ in range(depth):
        params["blocks"].append({
            "ln1_g": jnp.ones((D,), jnp.float32),
            "ln1_b": jnp.zeros((D,), jnp.float32),
            "qkv_w": nrm((D, 3 * D)),
            "qkv_b": jnp.zeros((3 * D,), jnp.float32),
            "proj_w": nrm((D, D)),
            "proj_b": jnp.zeros((D,), jnp.float32),
            "ln2_g": jnp.ones((D,), jnp.float32),
            "ln2_b": jnp.zeros((D,), jnp.float32),
            "fc1_w": nrm((D, mlp_hidden)),
            "fc1_b": jnp.zeros((mlp_hidden,), jnp.float32),
            "fc2_w": nrm((mlp_hidden, D)),
            "fc2_b": jnp.zeros((D,), jnp.float32),
        })
    return params


# ---------------------------------------------------------------------------
# Forward pass — mirrors timm ViT with num_classes=0 (CLS-token features)
# ---------------------------------------------------------------------------
def vision_encoder_forward(image, params, *, patch, heads):
    N, C, H, W = image.shape
    P = patch
    gh, gw = H // P, W // P
    num_patches = gh * gw
    D = params["patch_w"].shape[1]
    S = num_patches + 1
    dh = D // heads

    # --- patch embedding: conv(kernel=stride=P) as a matmul over flattened patches ---
    # Cast to bf16 FIRST so the XLA NCHW -> (N*np, C*P*P) transpose copy moves half the bytes.
    # TODO(synk): expressing the patch gather inside the kernel needs a manual strided-DMA gather.
    x = image.astype(jnp.bfloat16)
    x = x.reshape(N, C, gh, P, gw, P).transpose(0, 2, 4, 1, 3, 5)
    x = x.reshape(N * num_patches, C * P * P)
    x = fused_linear(x, params["patch_w"], params["patch_b"])            # (N*np, D) bf16
    x = x.reshape(N, num_patches, D)

    # --- prepend CLS, add positional embedding ---
    # TODO(synk): fold CLS-prepend + pos-embed into the patch-embed epilogue to avoid this
    # full-activation XLA concatenate/add.
    cls = jnp.broadcast_to(params["cls"], (N, 1, D))
    x = jnp.concatenate([cls, x.astype(jnp.float32)], axis=1) + params["pos"]
    x = x.astype(jnp.bfloat16).reshape(N * S, D)                         # residual stream (bf16)

    # --- transformer blocks ---
    for blk in params["blocks"]:
        # MHSA sub-block: LN1 fused into the qkv matmul, residual fused into the proj matmul.
        qkv = fused_linear(x, blk["qkv_w"], blk["qkv_b"],
                           gamma=blk["ln1_g"], beta=blk["ln1_b"])        # (N*S, 3D)
        attn = pallas_mhsa(qkv, batch=N, seq=S, heads=heads, dh=dh)      # (N*S, D)
        x = fused_linear(attn, blk["proj_w"], blk["proj_b"], residual=x)

        # MLP sub-block: LN2 + GELU fused into fc1, residual fused into fc2.
        h = fused_linear(x, blk["fc1_w"], blk["fc1_b"],
                         gamma=blk["ln2_g"], beta=blk["ln2_b"], act="gelu")
        x = fused_linear(h, blk["fc2_w"], blk["fc2_b"], residual=x)

    # --- final norm + CLS-token pooling -> (N, embed_dim) f32 ---
    cls_tok = x.reshape(N, S, D)[:, 0, :]
    return pallas_layernorm(cls_tok, params["ln_f_g"], params["ln_f_b"])


# ---------------------------------------------------------------------------
if __name__ == "__main__":
    # Small ViT config consistent with the module's forward semantics.
    N, C, H, W = 2, 3, 16, 16          # image: (N, 3, H, W), NCHW
    PATCH = 8                          # -> 2x2 = 4 patches, S = 5
    EMBED_DIM = 32
    HEADS = 4
    DEPTH = 2
    MLP_HIDDEN = 4 * EMBED_DIM
    NUM_PATCHES = (H // PATCH) * (W // PATCH)

    image = jax.random.normal(jax.random.PRNGKey(0), (N, C, H, W), jnp.float32)
    params = init_params(
        jax.random.PRNGKey(1),
        C=C, P=PATCH, D=EMBED_DIM, depth=DEPTH,
        mlp_hidden=MLP_HIDDEN, num_patches=NUM_PATCHES,
    )

    feats = vision_encoder_forward(image, params, patch=PATCH, heads=HEADS)
    feats = jax.block_until_ready(feats)

    assert feats.shape == (N, EMBED_DIM), feats.shape
    assert feats.dtype == jnp.float32
    assert bool(jnp.all(jnp.isfinite(feats)))
    print("KERNEL_OK")
</pallas_src>

<mosaic_0001>
module attributes {stable_mosaic.version = 11 : i64} {
  func.func @_fused_linear_kernel(%arg0: i32, %arg1: i32, %arg2: memref<8x192xbf16, #tpu.memory_space<vmem>>, %arg3: memref<192x32xbf16, #tpu.memory_space<vmem>>, %arg4: memref<1x32xf32, #tpu.memory_space<vmem>>, %arg5: memref<8x32xbf16, #tpu.memory_space<vmem>>) attributes {dimension_semantics = [#tpu.dimension_semantics<parallel>, #tpu.dimension_semantics<parallel>], iteration_bounds = array<i64: 1, 1>, scalar_prefetch = 0 : i64, scratch_operands = 0 : i64, tpu.core_type = #tpu.core_type<tc>, window_params = [{transform_indices = @transform_0, window_bounds = array<i64: 8, 192>}, {transform_indices = @transform_1, window_bounds = array<i64: 192, 32>}, {transform_indices = @transform_2, window_bounds = array<i64: 1, 32>}, {transform_indices = @transform_3, window_bounds = array<i64: 8, 32>}]} {
    %c0 = arith.constant 0 : index
    %c0_0 = arith.constant 0 : index
    %0 = vector.load %arg2[%c0, %c0_0] : memref<8x192xbf16, #tpu.memory_space<vmem>>, vector<8x192xbf16>
    %c0_1 = arith.constant 0 : index
    %c0_2 = arith.constant 0 : index
    %1 = vector.load %arg3[%c0_1, %c0_2] : memref<192x32xbf16, #tpu.memory_space<vmem>>, vector<192x32xbf16>
    %cst = arith.constant dense<0.000000e+00> : vector<8x32xf32>
    %2 = tpu.matmul %0, %1, %cst {dimension_numbers = #tpu.dot_dimension_numbers<[1], [0], [0], [1], [0, 0, 1, 1], [], []>} : vector<8x192xbf16>, vector<192x32xbf16>, vector<8x32xf32> -> vector<8x32xf32>
    %c0_3 = arith.constant 0 : index
    %c0_4 = arith.constant 0 : index
    %3 = vector.load %arg4[%c0_3, %c0_4] : memref<1x32xf32, #tpu.memory_space<vmem>>, vector<1x32xf32>
    %4 = vector.broadcast %3 : vector<1x32xf32> to vector<8x32xf32>
    %5 = arith.addf %2, %4 : vector<8x32xf32>
    %6 = arith.truncf %5 : vector<8x32xf32> to vector<8x32xbf16>
    %c0_5 = arith.constant 0 : index
    %c0_6 = arith.constant 0 : index
    %7 = vector.load %arg5[%c0_5, %c0_6] : memref<8x32xbf16, #tpu.memory_space<vmem>>, vector<8x32xbf16>
    tpu.vector_store %arg5[%c0_5, %c0_6], %6 {strides = array<i32>} : memref<8x32xbf16, #tpu.memory_space<vmem>>, vector<8x32xbf16>,
    return
  }
  func.func @transform_0(%arg0: i32, %arg1: i32) -> (i32, i32) {
    %c0_i32 = arith.constant 0 : i32
    %c0_i32_0 = arith.constant 0 : i32
    return %arg0, %c0_i32 : i32, i32
  }
  func.func @transform_1(%arg0: i32, %arg1: i32) -> (i32, i32) {
    %c0_i32 = arith.constant 0 : i32
    %c0_i32_0 = arith.constant 0 : i32
    return %c0_i32, %arg1 : i32, i32
  }
  func.func @transform_2(%arg0: i32, %arg1: i32) -> (i32, i32) {
    %c0_i32 = arith.constant 0 : i32
    %c0_i32_0 = arith.constant 0 : i32
    return %c0_i32, %arg1 : i32, i32
  }
  func.func @transform_3(%arg0: i32, %arg1: i32) -> (i32, i32) {
    %c0_i32 = arith.constant 0 : i32
    return %arg0, %arg1 : i32, i32
  }
}

</mosaic_0001>

<llo_original>
// kernel: tpu_custom_call.1
$region0: #{tpu_custom_call.1}
  #allocation0 [shape = 'u32[]', space=smem, size = 0x4, offset = 0x4, fixed_abs, tag = 'smem constant byte address 0x4 - core index']
  #allocation1 [shape = 'u32[144,128]{1,0:T(1,128)}', space=vmem, size = 0x12000, scoped, tag = 'internal scratch']
  %s0 = inlined_call_operand.vmem [shape: bf16[8,192], index: 0, kind: input, shape index: {}]
  %s1 = inlined_call_operand.vmem [shape: bf16[192,32], index: 1, kind: input, shape index: {}]
  %s2 = inlined_call_operand.vmem [shape: f32[1,32], index: 2, kind: input, shape index: {}]
  %s3 = inlined_call_operand.hbm [shape: bf16[8,32], index: 3, kind: output, shape index: {}]
  %s4 = sld [smem:[#allocation0]]
  $region22: #{tpu_custom_call.1} parent=0
    _
  %s6 = ssub.s32 1, %s4
  %s7 = scalar_select 0, %s6, %s4
  $region1: #{tpu_custom_call.1} parent=0
    #allocation2 [shape = 'u8[2048]{0}', space=vmem, size = 0x800, scoped, tag = 'output window, operand 0, single buffered']
    #allocation3 [shape = 's32[1]{0}', space=sflag, size = 0x4, scoped, tag = 'scoped memory for tpu_custom_call.1']
    %8 = vsyncpa [#allocation3], 0
    // Predicated region
    $region2: #{tpu_custom_call.1} parent=1 // pred_check
      _
    $region3: #{tpu_custom_call.1} parent=1 // pred_check_branch
      %10 = sbr.rel (0) target = $region5
    $region4: #{tpu_custom_call.1} parent=1 // pred_region
      _
    $region5: #{tpu_custom_call.1} parent=1 // pred_fallthru
      _
    // Predicated region
    $region6: #{tpu_custom_call.1} parent=1 // pred_check
      _
    $region7: #{tpu_custom_call.1} parent=1 // pred_check_branch
      %12 = sbr.rel (0) target = $region9
    $region8: #{tpu_custom_call.1} parent=1 // pred_region
      _
    $region9: #{tpu_custom_call.1} parent=1 // pred_fallthru
      _
    // Predicated region
    $region10: #{tpu_custom_call.1} parent=1 // pred_check
      _
    $region11: #{tpu_custom_call.1} parent=1 // pred_check_branch
      %14 = sbr.rel (0) target = $region13
    $region12: #{tpu_custom_call.1} parent=1 // pred_region
      _
    $region13: #{tpu_custom_call.1} parent=1 // pred_fallthru
      _
    %v16 = vld [vmem:[%s0] sm:$0xff]
    %v17 = vld [vmem:[%s1] sm:$0xf]
    %v18 = vld [vmem:[%s1 + $0x4] sm:$0xf]
    %v19 = vld [vmem:[%s1 + $0x8] sm:$0xf]
    %v20 = vld [vmem:[%s1 + $0xc] sm:$0xf]
    %v21 = vld [vmem:[%s1 + $0x10] sm:$0xf]
    %v22 = vld [vmem:[%s1 + $0x14] sm:$0xf]
    %v23 = vld [vmem:[%s1 + $0x18] sm:$0xf]
    %v24 = vld [vmem:[%s1 + $0x1c] sm:$0xf]
    %v25 = vld [vmem:[%s1 + $0x20] sm:$0xf]
    %v26 = vld [vmem:[%s1 + $0x24] sm:$0xf]
    %v27 = vld [vmem:[%s1 + $0x28] sm:$0xf]
    %v28 = vld [vmem:[%s1 + $0x2c] sm:$0xf]
    %v29 = vld [vmem:[%s1 + $0x30] sm:$0xf]
    %v30 = vld [vmem:[%s1 + $0x34] sm:$0xf]
    %v31 = vld [vmem:[%s1 + $0x38] sm:$0xf]
    %v32 = vld [vmem:[%s1 + $0x3c] sm:$0xf]
    %v33 = vld [vmem:[%s1 + $0x40] sm:$0xf]
    %v34 = vld [vmem:[%s1 + $0x44] sm:$0xf]
    %v35 = vld [vmem:[%s1 + $0x48] sm:$0xf]
    %v36 = vld [vmem:[%s1 + $0x4c] sm:$0xf]
    %v37 = vld [vmem:[%s1 + $0x50] sm:$0xf]
    %v38 = vld [vmem:[%s1 + $0x54] sm:$0xf]
    %v39 = vld [vmem:[%s1 + $0x58] sm:$0xf]
    %v40 = vld [vmem:[%s1 + $0x5c] sm:$0xf]
    %v41 = vld [vmem:[%s2] sm:$0x1]
    %v43 = vlaneseq
    %v44 = vshrl.u32 %v43, 7
    %v45 = vsub.s32 0, %v44
    %v46 = vrot.slane %v41, %v45
    %v49 = vunpack.c.l.b16 %v16
    %v50 = vunpack.c.h.b16 %v16
    %v51 = vpack.c.b16 %v49, %v49
    %v52 = vpack.c.b16 %v50, %v50
    %v78 = vunpack.c.l.b16 %v17
    %v79 = vunpack.c.l.b16 %v18
    %v80 = vunpack.c.l.b16 %v19
    %v81 = vunpack.c.l.b16 %v20
    %v82 = vunpack.c.l.b16 %v21
    %v83 = vunpack.c.l.b16 %v22
    %v84 = vunpack.c.l.b16 %v23
    %v85 = vunpack.c.l.b16 %v24
    %v86 = vunpack.c.l.b16 %v25
    %v87 = vunpack.c.l.b16 %v26
    %v88 = vunpack.c.l.b16 %v27
    %v89 = vunpack.c.l.b16 %v28
    %v90 = vunpack.c.l.b16 %v29
    %v91 = vunpack.c.l.b16 %v30
    %v92 = vunpack.c.l.b16 %v31
    %v93 = vunpack.c.l.b16 %v32
    %v94 = vunpack.c.l.b16 %v33
    %v95 = vunpack.c.l.b16 %v34
    %v96 = vunpack.c.l.b16 %v35
    %v97 = vunpack.c.l.b16 %v36
    %v98 = vunpack.c.l.b16 %v37
    %v99 = vunpack.c.l.b16 %v38
    %v100 = vunpack.c.l.b16 %v39
    %v101 = vunpack.c.l.b16 %v40
    %v102 = vpack.c.b16 %v79, %v78
    %v103 = vpack.c.b16 %v81, %v80
    %v104 = vpack.c.b16 %v83, %v82
    %v105 = vpack.c.b16 %v85, %v84
    %v106 = vpack.c.b16 %v87, %v86
    %v107 = vpack.c.b16 %v89, %v88
    %v108 = vpack.c.b16 %v91, %v90
    %v109 = vpack.c.b16 %v93, %v92
    %v110 = vpack.c.b16 %v95, %v94
    %v111 = vpack.c.b16 %v97, %v96
    %v112 = vpack.c.b16 %v99, %v98
    %v113 = vpack.c.b16 %v101, %v100
    %vm126 = vcmask 523264
    %v128 = vsel %vm126, %v52, 0
    %130 = vmatprep.subr.bf16.mxu0 0
    %131 = vmatpush1.bf16.msra.mxu0 %v102
    %132 = vmatprep.subr.bf16.mxu0 0
    %133 = vmatpush1.bf16.msra.mxu0 %v103
    %134 = vmatprep.subr.bf16.mxu0 0
    %135 = vmatpush1.bf16.msra.mxu0 %v104
    %136 = vmatprep.subr.bf16.mxu0 0
    %137 = vmatpush1.bf16.msra.mxu0 %v105
    %138 = vmatprep.subr.bf16.mxu0 0
    %139 = vmatpush1.bf16.msra.mxu0 %v106
    %140 = vmatprep.subr.bf16.mxu0 0
    %141 = vmatpush1.bf16.msra.mxu0 %v107
    %142 = vmatprep.subr.bf16.mxu0 0
    %143 = vmatpush1.bf16.msra.mxu0 %v108
    %144 = vmatprep.subr.bf16.mxu0 0
    %145 = vmatpush1.bf16.msra.mxu0 %v109
    %146 = vmatprep.subr.bf16.mxu0 0
    %147 = vmatpush1.bf16.msra.mxu0 %v110
    %148 = vmatprep.subr.bf16.mxu0 0
    %149 = vmatpush1.bf16.msra.mxu0 %v111
    %150 = vmatprep.subr.bf16.mxu0 0
    %151 = vmatpush1.bf16.msra.mxu0 %v112
    %152 = vmatprep.subr.bf16.mxu0 0
    %153 = vmatpush1.bf16.msra.mxu0 %v113
    %154 = vmatprep.subr.bf16.mxu0 0
    %155 = vmatpush1.bf16.msra.mxu0 0
    %156 = vmatprep.subr.bf16.mxu0 0
    %157 = vmatpush1.bf16.msra.mxu0 0
    %158 = vmatprep.subr.bf16.mxu0 0
    %159 = vmatpush1.bf16.msra.mxu0 0
    %160 = vmatprep.subr.bf16.mxu0 0
    %161 = vmatpush1.bf16.msra.mxu0 0
    %162 = vmatprep.mubr.bf16.mxu0 %v128
    %163 = vmatmul.mubr.bf16.gmra.mrb[0].mxu0 %v51
    %v164 = vpop.f32.mrb[0].mxu0
    %v165 = vadd.f32 %v46, %v164
    %v166 = vpop.f32.mrb[0].mxu0
    %v167 = vpop.f32.mrb[0].mxu0
    %v168 = vpop.f32.mrb[0].mxu0
    %169 = vdwg.mxu0
    %v170 = vpack.c.bf16 %v165, %v165
    %vm171 = vcmask 257024
    %172 = vst.msk [vmem:[#allocation2] sm:$0xf] %vm171, %v170
    // Predicated region
    $region14: #{tpu_custom_call.1} parent=1 // pred_check
      _
    $region15: #{tpu_custom_call.1} parent=1 // pred_check_branch
      %174 = sbr.rel (0) target = $region17
    $region16: #{tpu_custom_call.1} parent=1 // pred_region
      %s176 = ssub.s32 64, 64
      %177 = vsyncadd [#allocation3], %s176
      %s179 = sshll.u32 [#allocation2], 4
      %s180 = int_to_ptr.vmem [resolvable:$true] %s179
      %182 = dma.vmem_to_hbm [thread:$0]  %s180, 64, %s3, [#allocation3]
    $region17: #{tpu_custom_call.1} parent=1 // pred_fallthru
      _
    // Predicated region
    $region18: #{tpu_custom_call.1} parent=1 // pred_check
      _
    $region19: #{tpu_custom_call.1} parent=1 // pred_check_branch
      %184 = sbr.rel (0) target = $region21
    $region20: #{tpu_custom_call.1} parent=1 // pred_region
      %185 = dma.done [#allocation3], 64
    $region21: #{tpu_custom_call.1} parent=1 // pred_fallthru
      _
    %186 = vsyncpa [#allocation3], 1

</llo_original>
